<compile_context>
chip_gen: v7x
topology: tpu7x:2x2x1
jax: 0.10.0
libtpu: 0.0.40
codegen_flags: <defaults>
</compile_context>

<pallas_src>
import functools

import jax
import jax.numpy as jnp
from jax import lax
from jax.experimental import pallas as pl
from jax.experimental.pallas import tpu as pltpu


def _sigmoid(v):
    # exp -> EUP, approx reciprocal -> EUP; no VPU divide.
    return pl.reciprocal(1.0 + jnp.exp(-v), approx=True)


def _cbam_conv_kernel(x_ref, w3_ref, b3_ref, w4_ref, b4_ref, w1_ref, w2_ref,
                      wc_ref, bc_ref, o_ref, *, H, W, C, Cout, B):
    HW = H * W
    f32 = jnp.float32

    # ---- hoisted: weight loads (once per grid step, shared by all B images) --
    w3 = w3_ref[...]            # [Cr, C]   f32
    b3 = b3_ref[...]            # [Cr, 1]   f32
    w4 = w4_ref[...]            # [C, Cr]   f32
    b4 = b4_ref[...]            # [C, 1]    f32
    w1 = w1_ref[...]            # [Cr, C]   f32
    w2 = w2_ref[...]            # [C, Cr]   f32
    wc = wc_ref[...]            # [9*Cout, C] bf16 (cast hoisted to wrapper)
    bc = bc_ref[...]            # [Cout, 1] f32

    # ---- hoisted: O(HW) boundary masks for the 9 taps (depend on H, W only) --
    lane = lax.broadcasted_iota(jnp.int32, (1, HW), 1)
    if (W & (W - 1)) == 0:                          # power-of-two W
        h_of = lane >> (W.bit_length() - 1)
        w_of = lane & (W - 1)
    else:
        h_of = lane // W
        w_of = lane % W
    row_ok = {-1: h_of >= 1, 0: None, 1: h_of <= H - 2}
    col_ok = {-1: w_of >= 1, 0: None, 1: w_of <= W - 2}
    masks = {}
    for dh in (-1, 0, 1):
        for dw in (-1, 0, 1):
            conds = [c for c in (row_ok[dh], col_ok[dw]) if c is not None]
            if conds:
                m = conds[0]
                for c in conds[1:]:
                    m = m & c
                masks[(dh, dw)] = m.astype(f32)     # [1, HW] {0,1}
            else:
                masks[(dh, dw)] = None              # center tap: no mask

    col2 = lax.broadcasted_iota(jnp.int32, (C, 2), 1)   # hoisted pooled-stack iota

    # ---- per-image processing (B images per grid step) ----------------------
    for b in range(B):
        x = x_ref[b]                                     # [C, HW] f32

        # ------------------------- channel attention -------------------------
        avg = jnp.mean(x, axis=1, keepdims=True)         # [C, 1]
        mx = jnp.max(x, axis=1, keepdims=True)           # [C, 1]
        pooled = jnp.where(col2 == 0,
                           jnp.broadcast_to(avg, (C, 2)),
                           jnp.broadcast_to(mx, (C, 2)))  # [C, 2] (avg|max)
        h1 = jnp.maximum(jnp.dot(w3, pooled, preferred_element_type=f32) + b3, 0.0)
        z2 = jnp.dot(w4, h1, preferred_element_type=f32) + b4   # [C, 2]
        z = jnp.sum(z2, axis=1, keepdims=True)           # avg branch + max branch
        chn_att = _sigmoid(z)                            # [C, 1]
        xc = x * chn_att                                 # [C, HW]

        # ------------------------- spatial attention -------------------------
        s1 = jnp.maximum(jnp.dot(w1, xc, preferred_element_type=f32), 0.0)
        s2 = jnp.dot(w2, s1, preferred_element_type=f32)         # [C, HW]
        # fc1/fc2 are bias-free -> torch "max branch" == avg branch exactly.
        xs = xc * _sigmoid(2.0 * s2)                     # [C, HW]

        # -------------------- 3x3 conv, stride 1, pad 1 ----------------------
        # Per-tap channel contraction (one matmul, bf16 operands, f32 acc):
        #   y[(kh*3+kw)*Cout + co, p] = sum_c conv_w[co, c, kh, kw] * xs[c, p]
        y = jnp.dot(wc, xs.astype(jnp.bfloat16),
                    preferred_element_type=f32)          # [9*Cout, HW]

        # Spatial shift per tap = lane roll (XLU) + O(HW) boundary mask (VPU).
        acc = jnp.zeros((Cout, HW), f32)
        for kh in range(3):
            for kw in range(3):
                k = kh * 3 + kw
                dh, dw = kh - 1, kw - 1
                yk = y[k * Cout:(k + 1) * Cout, :]       # [Cout, HW] (8-aligned)
                delta = dh * W + dw
                if delta != 0:
                    # want shifted[j] = yk[j + delta]  (valid region only)
                    yk = pltpu.roll(yk, shift=(-delta) % HW, axis=1)
                m = masks[(dh, dw)]
                acc = acc + yk if m is None else acc + yk * m
        o_ref[b] = (acc + bc).astype(o_ref.dtype)        # [Cout, HW]


def _pick_block_b(N):
    # Batch a few images per grid step (amortize per-step overhead) while
    # keeping >= 2 grid steps so both v7x TensorCores get work.
    target = max(1, min(8, N // 2))
    for b in range(target, 0, -1):
        if N % b == 0:
            return b
    return 1


def cbam_conv2d(x_nchw, params, *, block_b=None):
    """CBAMConv2d forward (3x3 conv, stride=1, pad=1). NCHW in -> NCHW out."""
    N, C, H, W = x_nchw.shape
    Cout = params["conv_b"].shape[0]
    Cr = params["w3"].shape[0]
    HW = H * W

    # CBAM's fc1/fc2 are bias-free; the sigmoid(2*s) shortcut relies on it.
    assert "b1" not in params and "b2" not in params

    if block_b is None:
        block_b = _pick_block_b(N)
    assert N % block_b == 0

    # NCHW -> [N, C, HW] is a pure reshape: lane-dense, no transpose needed.
    # NOTE: for large H*W, x can be passed as bf16 to halve the per-step DMA.
    x = x_nchw.reshape(N, C, HW).astype(jnp.float32)

    w3 = params["w3"].astype(jnp.float32)                   # [Cr, C] (fc3.weight)
    b3 = params["b3"].reshape(Cr, 1).astype(jnp.float32)
    w4 = params["w4"].astype(jnp.float32)                   # [C, Cr] (fc4.weight)
    b4 = params["b4"].reshape(C, 1).astype(jnp.float32)
    w1 = params["w1"].astype(jnp.float32)                   # [Cr, C] (fc1, 1x1 conv)
    w2 = params["w2"].astype(jnp.float32)                   # [C, Cr] (fc2, 1x1 conv)

    # Pad Cout to a multiple of 8 so per-tap slices stay on (8,128) f32 tiles.
    Cout_p = -(-Cout // 8) * 8
    conv_w = params["conv_w"]
    conv_b = params["conv_b"]
    if Cout_p != Cout:
        conv_w = jnp.pad(conv_w, ((0, Cout_p - Cout), (0, 0), (0, 0), (0, 0)))
        conv_b = jnp.pad(conv_b, ((0, Cout_p - Cout),))
    # conv weight [Cout, C, 3, 3] -> [(kh,kw,co), c] = [9*Cout, C], bf16 (hoisted cast)
    wc = jnp.transpose(conv_w, (2, 3, 0, 1)).reshape(9 * Cout_p, C)
    wc = wc.astype(jnp.bfloat16)
    bc = conv_b.reshape(Cout_p, 1).astype(jnp.float32)

    kernel = functools.partial(_cbam_conv_kernel, H=H, W=W, C=C,
                               Cout=Cout_p, B=block_b)

    out = pl.pallas_call(
        kernel,
        out_shape=jax.ShapeDtypeStruct((N, Cout_p, HW), jnp.float32),
        grid_spec=pltpu.PrefetchScalarGridSpec(
            num_scalar_prefetch=0,
            grid=(N // block_b,),
            in_specs=[
                pl.BlockSpec((block_b, C, HW), lambda n: (n, 0, 0)),
                pl.BlockSpec(w3.shape, lambda n: (0, 0)),
                pl.BlockSpec(b3.shape, lambda n: (0, 0)),
                pl.BlockSpec(w4.shape, lambda n: (0, 0)),
                pl.BlockSpec(b4.shape, lambda n: (0, 0)),
                pl.BlockSpec(w1.shape, lambda n: (0, 0)),
                pl.BlockSpec(w2.shape, lambda n: (0, 0)),
                pl.BlockSpec(wc.shape, lambda n: (0, 0)),
                pl.BlockSpec(bc.shape, lambda n: (0, 0)),
            ],
            out_specs=pl.BlockSpec((block_b, Cout_p, HW), lambda n: (n, 0, 0)),
        ),
        compiler_params=pltpu.CompilerParams(dimension_semantics=("parallel",)),
    )(x, w3, b3, w4, b4, w1, w2, wc, bc)

    out = out.reshape(N, Cout_p, H, W)                      # already NCHW
    if Cout_p != Cout:
        out = out[:, :Cout]
    return out


# ----------------------------- pure-JAX reference ----------------------------

def reference(x_nchw, p):
    x = x_nchw.astype(jnp.float32)
    avg = x.mean(axis=(2, 3))                               # [N, C]
    mx = x.max(axis=(2, 3))                                 # [N, C]

    def mlp(v):
        h = jnp.maximum(v @ p["w3"].T + p["b3"], 0.0)
        return h @ p["w4"].T + p["b4"]

    chn = jax.nn.sigmoid(mlp(avg) + mlp(mx))[:, :, None, None]
    xc = x * chn

    spa_avg = jnp.einsum("rc,nchw->nrhw", p["w1"], xc)
    spa_avg = jnp.einsum("cr,nrhw->nchw", p["w2"], jnp.maximum(spa_avg, 0.0))
    # literal torch "max branch" (mathematically equal to the avg branch)
    t = -jnp.einsum("rc,nchw->nrhw", p["w1"], -xc)
    t = jnp.maximum(t, 0.0)
    spa_max = -jnp.einsum("cr,nrhw->nchw", p["w2"], -t)
    xs = xc * jax.nn.sigmoid(spa_avg + spa_max)

    y = lax.conv_general_dilated(
        xs, p["conv_w"], window_strides=(1, 1), padding=((1, 1), (1, 1)),
        dimension_numbers=("NCHW", "OIHW", "NCHW"))
    return y + p["conv_b"][None, :, None, None]


# ------------------------------------ main -----------------------------------

if __name__ == "__main__":
    # CBAMConv2d(in_channels=16, out_channels=8, kernel_size=3, stride=1,
    #            padding=1, dilation=1, groups=1, reduction_ratio=4)
    N, C, H, W = 2, 16, 16, 16
    R = 4
    Cr = C // R
    Cout = 8

    key = jax.random.PRNGKey(0)
    ks = jax.random.split(key, 9)

    w3 = 0.1 * jax.random.normal(ks[0], (Cr, C), jnp.float32)    # fc3.weight
    b3 = 0.1 * jax.random.normal(ks[1], (Cr,), jnp.float32)      # fc3.bias
    w4 = 0.1 * jax.random.normal(ks[2], (C, Cr), jnp.float32)    # fc4.weight
    b4 = 0.1 * jax.random.normal(ks[3], (C,), jnp.float32)       # fc4.bias
    w1 = 0.1 * jax.random.normal(ks[4], (Cr, C), jnp.float32)    # fc1.weight (1x1, no bias)
    w2 = 0.1 * jax.random.normal(ks[5], (C, Cr), jnp.float32)    # fc2.weight (1x1, no bias)
    conv_w = 0.1 * jax.random.normal(ks[6], (Cout, C, 3, 3), jnp.float32)
    conv_b = 0.1 * jax.random.normal(ks[7], (Cout,), jnp.float32)

    params = dict(w3=w3, b3=b3, w4=w4, b4=b4, w1=w1, w2=w2,
                  conv_w=conv_w, conv_b=conv_b)

    x = jax.random.normal(ks[8], (N, C, H, W), jnp.float32)

    out = jax.block_until_ready(cbam_conv2d(x, params))
    ref = jax.block_until_ready(reference(x, params))

    assert out.shape == (N, Cout, H, W), out.shape
    max_err = float(jnp.max(jnp.abs(out - ref)))
    assert jnp.allclose(out, ref, atol=1e-2, rtol=1e-2), max_err

    print("KERNEL_OK")
</pallas_src>

<mosaic_0001>
module attributes {stable_mosaic.version = 11 : i64} {
  func.func @_cbam_conv_kernel(%arg0: i32, %arg1: memref<1x16x256xf32, #tpu.memory_space<vmem>>, %arg2: memref<4x16xf32, #tpu.memory_space<vmem>>, %arg3: memref<4x1xf32, #tpu.memory_space<vmem>>, %arg4: memref<16x4xf32, #tpu.memory_space<vmem>>, %arg5: memref<16x1xf32, #tpu.memory_space<vmem>>, %arg6: memref<4x16xf32, #tpu.memory_space<vmem>>, %arg7: memref<16x4xf32, #tpu.memory_space<vmem>>, %arg8: memref<72x16xbf16, #tpu.memory_space<vmem>>, %arg9: memref<8x1xf32, #tpu.memory_space<vmem>>, %arg10: memref<1x8x256xf32, #tpu.memory_space<vmem>>) attributes {dimension_semantics = [#tpu.dimension_semantics<parallel>], iteration_bounds = array<i64: 2>, scalar_prefetch = 0 : i64, scratch_operands = 0 : i64, tpu.core_type = #tpu.core_type<tc>, window_params = [{transform_indices = @transform_0, window_bounds = array<i64: 1, 16, 256>}, {pipeline_mode = #tpu.pipeline_mode<synchronous>, transform_indices = @transform_1, window_bounds = array<i64: 4, 16>}, {pipeline_mode = #tpu.pipeline_mode<synchronous>, transform_indices = @transform_2, window_bounds = array<i64: 4, 1>}, {pipeline_mode = #tpu.pipeline_mode<synchronous>, transform_indices = @transform_3, window_bounds = array<i64: 16, 4>}, {pipeline_mode = #tpu.pipeline_mode<synchronous>, transform_indices = @transform_4, window_bounds = array<i64: 16, 1>}, {pipeline_mode = #tpu.pipeline_mode<synchronous>, transform_indices = @transform_5, window_bounds = array<i64: 4, 16>}, {pipeline_mode = #tpu.pipeline_mode<synchronous>, transform_indices = @transform_6, window_bounds = array<i64: 16, 4>}, {pipeline_mode = #tpu.pipeline_mode<synchronous>, transform_indices = @transform_7, window_bounds = array<i64: 72, 16>}, {pipeline_mode = #tpu.pipeline_mode<synchronous>, transform_indices = @transform_8, window_bounds = array<i64: 8, 1>}, {transform_indices = @transform_9, window_bounds = array<i64: 1, 8, 256>}]} {
    %c0 = arith.constant 0 : index
    %c0_0 = arith.constant 0 : index
    %0 = vector.load %arg2[%c0, %c0_0] : memref<4x16xf32, #tpu.memory_space<vmem>>, vector<4x16xf32>
    %c0_1 = arith.constant 0 : index
    %c0_2 = arith.constant 0 : index
    %1 = vector.load %arg3[%c0_1, %c0_2] : memref<4x1xf32, #tpu.memory_space<vmem>>, vector<4x1xf32>
    %c0_3 = arith.constant 0 : index
    %c0_4 = arith.constant 0 : index
    %2 = vector.load %arg4[%c0_3, %c0_4] : memref<16x4xf32, #tpu.memory_space<vmem>>, vector<16x4xf32>
    %c0_5 = arith.constant 0 : index
    %c0_6 = arith.constant 0 : index
    %3 = vector.load %arg5[%c0_5, %c0_6] : memref<16x1xf32, #tpu.memory_space<vmem>>, vector<16x1xf32>
    %c0_7 = arith.constant 0 : index
    %c0_8 = arith.constant 0 : index
    %4 = vector.load %arg6[%c0_7, %c0_8] : memref<4x16xf32, #tpu.memory_space<vmem>>, vector<4x16xf32>
    %c0_9 = arith.constant 0 : index
    %c0_10 = arith.constant 0 : index
    %5 = vector.load %arg7[%c0_9, %c0_10] : memref<16x4xf32, #tpu.memory_space<vmem>>, vector<16x4xf32>
    %c0_11 = arith.constant 0 : index
    %c0_12 = arith.constant 0 : index
    %6 = vector.load %arg8[%c0_11, %c0_12] : memref<72x16xbf16, #tpu.memory_space<vmem>>, vector<72x16xbf16>
    %c0_13 = arith.constant 0 : index
    %c0_14 = arith.constant 0 : index
    %7 = vector.load %arg9[%c0_13, %c0_14] : memref<8x1xf32, #tpu.memory_space<vmem>>, vector<8x1xf32>
    %8 = tpu.iota {dimensions = array<i32: 1>} : vector<1x256xi32>
    %c4_i32 = arith.constant 4 : i32
    %9 = vector.broadcast %c4_i32 : i32 to vector<1x256xi32>
    %10 = arith.shrsi %8, %9 : vector<1x256xi32>
    %c15_i32 = arith.constant 15 : i32
    %11 = vector.broadcast %c15_i32 : i32 to vector<1x256xi32>
    %12 = arith.andi %8, %11 : vector<1x256xi32>
    %c1_i32 = arith.constant 1 : i32
    %13 = vector.broadcast %c1_i32 : i32 to vector<1x256xi32>
    %14 = arith.cmpi sge, %10, %13 : vector<1x256xi32>
    %c14_i32 = arith.constant 14 : i32
    %15 = vector.broadcast %c14_i32 : i32 to vector<1x256xi32>
    %16 = arith.cmpi sle, %10, %15 : vector<1x256xi32>
    %c1_i32_15 = arith.constant 1 : i32
    %17 = vector.broadcast %c1_i32_15 : i32 to vector<1x256xi32>
    %18 = arith.cmpi sge, %12, %17 : vector<1x256xi32>
    %c14_i32_16 = arith.constant 14 : i32
    %19 = vector.broadcast %c14_i32_16 : i32 to vector<1x256xi32>
    %20 = arith.cmpi sle, %12, %19 : vector<1x256xi32>
    %21 = arith.andi %14, %18 : vector<1x256xi1>
    %22 = arith.extui %21 : vector<1x256xi1> to vector<1x256xi32>
    %23 = arith.sitofp %22 : vector<1x256xi32> to vector<1x256xf32>
    %24 = arith.extui %14 : vector<1x256xi1> to vector<1x256xi32>
    %25 = arith.sitofp %24 : vector<1x256xi32> to vector<1x256xf32>
    %26 = arith.andi %14, %20 : vector<1x256xi1>
    %27 = arith.extui %26 : vector<1x256xi1> to vector<1x256xi32>
    %28 = arith.sitofp %27 : vector<1x256xi32> to vector<1x256xf32>
    %29 = arith.extui %18 : vector<1x256xi1> to vector<1x256xi32>
    %30 = arith.sitofp %29 : vector<1x256xi32> to vector<1x256xf32>
    %31 = arith.extui %20 : vector<1x256xi1> to vector<1x256xi32>
    %32 = arith.sitofp %31 : vector<1x256xi32> to vector<1x256xf32>
    %33 = arith.andi %16, %18 : vector<1x256xi1>
    %34 = arith.extui %33 : vector<1x256xi1> to vector<1x256xi32>
    %35 = arith.sitofp %34 : vector<1x256xi32> to vector<1x256xf32>
    %36 = arith.extui %16 : vector<1x256xi1> to vector<1x256xi32>
    %37 = arith.sitofp %36 : vector<1x256xi32> to vector<1x256xf32>
    %38 = arith.andi %16, %20 : vector<1x256xi1>
    %39 = arith.extui %38 : vector<1x256xi1> to vector<1x256xi32>
    %40 = arith.sitofp %39 : vector<1x256xi32> to vector<1x256xf32>
    %41 = tpu.iota {dimensions = array<i32: 1>} : vector<16x2xi32>
    %c0_17 = arith.constant 0 : index
    %c0_18 = arith.constant 0 : index
    %c0_19 = arith.constant 0 : index
    %42 = vector.load %arg1[%c0_17, %c0_18, %c0_19] : memref<1x16x256xf32, #tpu.memory_space<vmem>>, vector<1x16x256xf32>
    %43 = vector.shape_cast %42 : vector<1x16x256xf32> to vector<16x256xf32>
    %cst = arith.constant dense<0.000000e+00> : vector<16xf32>
    %44 = vector.multi_reduction <add>, %43, %cst [1] : vector<16x256xf32> to vector<16xf32>
    %45 = vector.shape_cast %44 : vector<16xf32> to vector<16x1xf32>
    %cst_20 = arith.constant 2.560000e+02 : f32
    %46 = vector.broadcast %cst_20 : f32 to vector<16x1xf32>
    %47 = arith.divf %45, %46 : vector<16x1xf32>
    %cst_21 = arith.constant dense<0xFF800000> : vector<16xf32>
    %48 = vector.multi_reduction <maximumf>, %43, %cst_21 [1] : vector<16x256xf32> to vector<16xf32>
    %49 = vector.shape_cast %48 : vector<16xf32> to vector<16x1xf32>
    %c0_i32 = arith.constant 0 : i32
    %50 = vector.broadcast %c0_i32 : i32 to vector<16x2xi32>
    %51 = arith.cmpi eq, %41, %50 : vector<16x2xi32>
    %52 = vector.shape_cast %47 : vector<16x1xf32> to vector<16x1xf32>
    %53 = vector.broadcast %52 : vector<16x1xf32> to vector<16x2xf32>
    %54 = vector.shape_cast %49 : vector<16x1xf32> to vector<16x1xf32>
    %55 = vector.broadcast %54 : vector<16x1xf32> to vector<16x2xf32>
    %56 = arith.select %51, %53, %55 : vector<16x2xi1>, vector<16x2xf32>
    %cst_22 = arith.constant dense<0.000000e+00> : vector<4x2xf32>
    %57 = tpu.matmul %0, %56, %cst_22 {dimension_numbers = #tpu.dot_dimension_numbers<[1], [0], [0], [1], [0, 0, 1, 1], [], []>} : vector<4x16xf32>, vector<16x2xf32>, vector<4x2xf32> -> vector<4x2xf32>
    %58 = vector.broadcast %1 : vector<4x1xf32> to vector<4x2xf32>
    %59 = arith.addf %57, %58 : vector<4x2xf32>
    %cst_23 = arith.constant 0.000000e+00 : f32
    %60 = vector.broadcast %cst_23 : f32 to vector<4x2xf32>
    %61 = arith.maximumf %59, %60 : vector<4x2xf32>
    %cst_24 = arith.constant dense<0.000000e+00> : vector<16x2xf32>
    %62 = tpu.matmul %2, %61, %cst_24 {dimension_numbers = #tpu.dot_dimension_numbers<[1], [0], [0], [1], [0, 0, 1, 1], [], []>} : vector<16x4xf32>, vector<4x2xf32>, vector<16x2xf32> -> vector<16x2xf32>
    %63 = vector.broadcast %3 : vector<16x1xf32> to vector<16x2xf32>
    %64 = arith.addf %62, %63 : vector<16x2xf32>
    %cst_25 = arith.constant dense<0.000000e+00> : vector<16xf32>
    %65 = vector.multi_reduction <add>, %64, %cst_25 [1] : vector<16x2xf32> to vector<16xf32>
    %66 = vector.shape_cast %65 : vector<16xf32> to vector<16x1xf32>
    %cst_26 = arith.constant 0.000000e+00 : f32
    %67 = vector.broadcast %cst_26 : f32 to vector<16x1xf32>
    %68 = arith.subf %67, %66 : vector<16x1xf32>
    %69 = math.exp %68 : vector<16x1xf32>
    %cst_27 = arith.constant 1.000000e+00 : f32
    %70 = vector.broadcast %cst_27 : f32 to vector<16x1xf32>
    %71 = arith.addf %70, %69 : vector<16x1xf32>
    %72 = tpu.reciprocal %71 {approx = true} : vector<16x1xf32> -> vector<16x1xf32>
    %73 = vector.broadcast %72 : vector<16x1xf32> to vector<16x256xf32>
    %74 = arith.mulf %43, %73 : vector<16x256xf32>
    %cst_28 = arith.constant dense<0.000000e+00> : vector<4x256xf32>
    %75 = tpu.matmul %4, %74, %cst_28 {dimension_numbers = #tpu.dot_dimension_numbers<[1], [0], [0], [1], [0, 0, 1, 1], [], []>} : vector<4x16xf32>, vector<16x256xf32>, vector<4x256xf32> -> vector<4x256xf32>
    %cst_29 = arith.constant 0.000000e+00 : f32
    %76 = vector.broadcast %cst_29 : f32 to vector<4x256xf32>
    %77 = arith.maximumf %75, %76 : vector<4x256xf32>
    %cst_30 = arith.constant dense<0.000000e+00> : vector<16x256xf32>
    %78 = tpu.matmul %5, %77, %cst_30 {dimension_numbers = #tpu.dot_dimension_numbers<[1], [0], [0], [1], [0, 0, 1, 1], [], []>} : vector<16x4xf32>, vector<4x256xf32>, vector<16x256xf32> -> vector<16x256xf32>
    %cst_31 = arith.constant 2.000000e+00 : f32
    %79 = vector.broadcast %cst_31 : f32 to vector<16x256xf32>
    %80 = arith.mulf %79, %78 : vector<16x256xf32>
    %cst_32 = arith.constant 0.000000e+00 : f32
    %81 = vector.broadcast %cst_32 : f32 to vector<16x256xf32>
    %82 = arith.subf %81, %80 : vector<16x256xf32>
    %83 = math.exp %82 : vector<16x256xf32>
    %cst_33 = arith.constant 1.000000e+00 : f32
    %84 = vector.broadcast %cst_33 : f32 to vector<16x256xf32>
    %85 = arith.addf %84, %83 : vector<16x256xf32>
    %86 = tpu.reciprocal %85 {approx = true} : vector<16x256xf32> -> vector<16x256xf32>
    %87 = arith.mulf %74, %86 : vector<16x256xf32>
    %88 = arith.truncf %87 : vector<16x256xf32> to vector<16x256xbf16>
    %cst_34 = arith.constant dense<0.000000e+00> : vector<72x256xf32>
    %89 = tpu.matmul %6, %88, %cst_34 {dimension_numbers = #tpu.dot_dimension_numbers<[1], [0], [0], [1], [0, 0, 1, 1], [], []>} : vector<72x16xbf16>, vector<16x256xbf16>, vector<72x256xf32> -> vector<72x256xf32>
    %cst_35 = arith.constant 0.000000e+00 : f32
    %90 = vector.broadcast %cst_35 : f32 to vector<8x256xf32>
    %91 = vector.extract_strided_slice %89 {offsets = [0, 0], sizes = [8, 256], strides = [1, 1]} : vector<72x256xf32> to vector<8x256xf32>
    %c17_i32 = arith.constant 17 : i32
    %92 = tpu.dynamic_rotate %91 by %c17_i32 dim 1 : vector<8x256xf32>, i32 -> vector<8x256xf32>
    %93 = vector.broadcast %23 : vector<1x256xf32> to vector<8x256xf32>
    %94 = arith.mulf %92, %93 : vector<8x256xf32>
    %95 = arith.addf %90, %94 : vector<8x256xf32>
    %96 = vector.extract_strided_slice %89 {offsets = [8, 0], sizes = [8, 256], strides = [1, 1]} : vector<72x256xf32> to vector<8x256xf32>
    %c16_i32 = arith.constant 16 : i32
    %97 = tpu.dynamic_rotate %96 by %c16_i32 dim 1 : vector<8x256xf32>, i32 -> vector<8x256xf32>
    %98 = vector.broadcast %25 : vector<1x256xf32> to vector<8x256xf32>
    %99 = arith.mulf %97, %98 : vector<8x256xf32>
    %100 = arith.addf %95, %99 : vector<8x256xf32>
    %101 = vector.extract_strided_slice %89 {offsets = [16, 0], sizes = [8, 256], strides = [1, 1]} : vector<72x256xf32> to vector<8x256xf32>
    %c15_i32_36 = arith.constant 15 : i32
    %102 = tpu.dynamic_rotate %101 by %c15_i32_36 dim 1 : vector<8x256xf32>, i32 -> vector<8x256xf32>
    %103 = vector.broadcast %28 : vector<1x256xf32> to vector<8x256xf32>
    %104 = arith.mulf %102, %103 : vector<8x256xf32>
    %105 = arith.addf %100, %104 : vector<8x256xf32>
    %106 = vector.extract_strided_slice %89 {offsets = [24, 0], sizes = [8, 256], strides = [1, 1]} : vector<72x256xf32> to vector<8x256xf32>
    %c1_i32_37 = arith.constant 1 : i32
    %107 = tpu.dynamic_rotate %106 by %c1_i32_37 dim 1 : vector<8x256xf32>, i32 -> vector<8x256xf32>
    %108 = vector.broadcast %30 : vector<1x256xf32> to vector<8x256xf32>
    %109 = arith.mulf %107, %108 : vector<8x256xf32>
    %110 = arith.addf %105, %109 : vector<8x256xf32>
    %111 = vector.extract_strided_slice %89 {offsets = [32, 0], sizes = [8, 256], strides = [1, 1]} : vector<72x256xf32> to vector<8x256xf32>
    %112 = arith.addf %110, %111 : vector<8x256xf32>
    %113 = vector.extract_strided_slice %89 {offsets = [40, 0], sizes = [8, 256], strides = [1, 1]} : vector<72x256xf32> to vector<8x256xf32>
    %c255_i32 = arith.constant 255 : i32
    %114 = tpu.dynamic_rotate %113 by %c255_i32 dim 1 : vector<8x256xf32>, i32 -> vector<8x256xf32>
    %115 = vector.broadcast %32 : vector<1x256xf32> to vector<8x256xf32>
    %116 = arith.mulf %114, %115 : vector<8x256xf32>
    %117 = arith.addf %112, %116 : vector<8x256xf32>
    %118 = vector.extract_strided_slice %89 {offsets = [48, 0], sizes = [8, 256], strides = [1, 1]} : vector<72x256xf32> to vector<8x256xf32>
    %c241_i32 = arith.constant 241 : i32
    %119 = tpu.dynamic_rotate %118 by %c241_i32 dim 1 : vector<8x256xf32>, i32 -> vector<8x256xf32>
    %120 = vector.broadcast %35 : vector<1x256xf32> to vector<8x256xf32>
    %121 = arith.mulf %119, %120 : vector<8x256xf32>
    %122 = arith.addf %117, %121 : vector<8x256xf32>
    %123 = vector.extract_strided_slice %89 {offsets = [56, 0], sizes = [8, 256], strides = [1, 1]} : vector<72x256xf32> to vector<8x256xf32>
    %c240_i32 = arith.constant 240 : i32
    %124 = tpu.dynamic_rotate %123 by %c240_i32 dim 1 : vector<8x256xf32>, i32 -> vector<8x256xf32>
    %125 = vector.broadcast %37 : vector<1x256xf32> to vector<8x256xf32>
    %126 = arith.mulf %124, %125 : vector<8x256xf32>
    %127 = arith.addf %122, %126 : vector<8x256xf32>
    %128 = vector.extract_strided_slice %89 {offsets = [64, 0], sizes = [8, 256], strides = [1, 1]} : vector<72x256xf32> to vector<8x256xf32>
    %c239_i32 = arith.constant 239 : i32
    %129 = tpu.dynamic_rotate %128 by %c239_i32 dim 1 : vector<8x256xf32>, i32 -> vector<8x256xf32>
    %130 = vector.broadcast %40 : vector<1x256xf32> to vector<8x256xf32>
    %131 = arith.mulf %129, %130 : vector<8x256xf32>
    %132 = arith.addf %127, %131 : vector<8x256xf32>
    %133 = vector.broadcast %7 : vector<8x1xf32> to vector<8x256xf32>
    %134 = arith.addf %132, %133 : vector<8x256xf32>
    %c0_38 = arith.constant 0 : index
    %c0_39 = arith.constant 0 : index
    %c0_40 = arith.constant 0 : index
    %135 = vector.load %arg10[%c0_38, %c0_39, %c0_40] : memref<1x8x256xf32, #tpu.memory_space<vmem>>, vector<1x8x256xf32>
    %136 = vector.shape_cast %135 : vector<1x8x256xf32> to vector<8x256xf32>
    %137 = vector.shape_cast %134 : vector<8x256xf32> to vector<1x8x256xf32>
    tpu.vector_store %arg10[%c0_38, %c0_39, %c0_40], %137 {strides = array<i32>} : memref<1x8x256xf32, #tpu.memory_space<vmem>>, vector<1x8x256xf32>,
    return
  }
  func.func @transform_0(%arg0: i32) -> (i32, i32, i32) {
    %c0_i32 = arith.constant 0 : i32
    %c0_i32_0 = arith.constant 0 : i32
    %c0_i32_1 = arith.constant 0 : i32
    return %arg0, %c0_i32, %c0_i32_0 : i32, i32, i32
  }
  func.func @transform_1(%arg0: i32) -> (i32, i32) {
    %c0_i32 = arith.constant 0 : i32
    %c0_i32_0 = arith.constant 0 : i32
    %c0_i32_1 = arith.constant 0 : i32
    return %c0_i32, %c0_i32_0 : i32, i32
  }
  func.func @transform_2(%arg0: i32) -> (i32, i32) {
    %c0_i32 = arith.constant 0 : i32
    %c0_i32_0 = arith.constant 0 : i32
    %c0_i32_1 = arith.constant 0 : i32
    return %c0_i32, %c0_i32_0 : i32, i32
  }
  func.func @transform_3(%arg0: i32) -> (i32, i32) {
    %c0_i32 = arith.constant 0 : i32
    %c0_i32_0 = arith.constant 0 : i32
    %c0_i32_1 = arith.constant 0 : i32
    return %c0_i32, %c0_i32_0 : i32, i32
  }
  func.func @transform_4(%arg0: i32) -> (i32, i32) {
    %c0_i32 = arith.constant 0 : i32
    %c0_i32_0 = arith.constant 0 : i32
    %c0_i32_1 = arith.constant 0 : i32
    return %c0_i32, %c0_i32_0 : i32, i32
  }
  func.func @transform_5(%arg0: i32) -> (i32, i32) {
    %c0_i32 = arith.constant 0 : i32
    %c0_i32_0 = arith.constant 0 : i32
    %c0_i32_1 = arith.constant 0 : i32
    return %c0_i32, %c0_i32_0 : i32, i32
  }
  func.func @transform_6(%arg0: i32) -> (i32, i32) {
    %c0_i32 = arith.constant 0 : i32
    %c0_i32_0 = arith.constant 0 : i32
    %c0_i32_1 = arith.constant 0 : i32
    return %c0_i32, %c0_i32_0 : i32, i32
  }
  func.func @transform_7(%arg0: i32) -> (i32, i32) {
    %c0_i32 = arith.constant 0 : i32
    %c0_i32_0 = arith.constant 0 : i32
    %c0_i32_1 = arith.constant 0 : i32
    return %c0_i32, %c0_i32_0 : i32, i32
  }
  func.func @transform_8(%arg0: i32) -> (i32, i32) {
    %c0_i32 = arith.constant 0 : i32
    %c0_i32_0 = arith.constant 0 : i32
    %c0_i32_1 = arith.constant 0 : i32
    return %c0_i32, %c0_i32_0 : i32, i32
  }
  func.func @transform_9(%arg0: i32) -> (i32, i32, i32) {
    %c0_i32 = arith.constant 0 : i32
    %c0_i32_0 = arith.constant 0 : i32
    %c0_i32_1 = arith.constant 0 : i32
    return %arg0, %c0_i32, %c0_i32_0 : i32, i32, i32
  }
}

</mosaic_0001>

<llo_original>
// kernel: tpu_custom_call.1
$region0: #{tpu_custom_call.1}
  #allocation0 [shape = 'u32[]', space=smem, size = 0x4, offset = 0x4, fixed_abs, tag = 'smem constant byte address 0x4 - core index']
  #allocation1 [shape = 'u32[144,128]{1,0:T(1,128)}', space=vmem, size = 0x12000, scoped, tag = 'internal scratch']
  %s0 = inlined_call_operand.vmem [shape: f32[2,16,256], index: 0, kind: input, shape index: {}]
  %s1 = inlined_call_operand.vmem [shape: f32[4,16], index: 1, kind: input, shape index: {}]
  %s2 = inlined_call_operand.vmem [shape: f32[4,1], index: 2, kind: input, shape index: {}]
  %s3 = inlined_call_operand.vmem [shape: f32[16,4], index: 3, kind: input, shape index: {}]
  %s4 = inlined_call_operand.vmem [shape: f32[16,1], index: 4, kind: input, shape index: {}]
  %s5 = inlined_call_operand.vmem [shape: f32[4,16], index: 5, kind: input, shape index: {}]
  %s6 = inlined_call_operand.vmem [shape: f32[16,4], index: 6, kind: input, shape index: {}]
  %s7 = inlined_call_operand.vmem [shape: bf16[72,16], index: 7, kind: input, shape index: {}]
  %s8 = inlined_call_operand.vmem [shape: f32[8,1], index: 8, kind: input, shape index: {}]
  %s9 = inlined_call_operand.hbm [shape: f32[2,8,256], index: 9, kind: output, shape index: {}]
  %s10 = sld [smem:[#allocation0]]
  $region69: #{tpu_custom_call.1} parent=0
    _
  %s12 = ssub.s32 1, %s10
  %s13 = scalar_select 0, %s12, %s10
  $region1: #{tpu_custom_call.1} parent=0
    #allocation2 [shape = 'u8[16384]{0}', space=vmem, size = 0x4000, scoped, tag = 'output window, operand 0']
    #allocation3 [shape = 's32[2]{0}', space=sflag, size = 0x8, scoped, tag = 'scoped memory for tpu_custom_call.1']
    %14 = vsyncpa [#allocation3], 0
    %s15 = scalar_lea.sflag [#allocation3], 1
    %16 = vsyncpa %s15, 0
    loop: start=0, step=1, limit=4
    $region2: #{tpu_custom_call.1} parent=1 // loop_pre_header
      _
    $region3: #{tpu_custom_call.1} parent=1 // loop_header
      %s18 = sphi 0, %s22
      %p19 = scmp.ge.s32.totalorder %s18, 4
      %s28 = sphi 0, %s30
      %s31 = sphi 0, %s28
      %s32 = sphi 0, %s31
      %s48 = sphi 0, %s32
      %s52 = sphi 0, %s52
      %s54 = sphi 0, %s52
      %s55 = sphi 0, %s54
      %s69 = sphi 0, %s55
      %s73 = sphi 0, %s73
      %s75 = sphi 0, %s73
      %s76 = sphi 0, %s75
      %s90 = sphi 0, %s76
      %s94 = sphi 0, %s94
      %s96 = sphi 0, %s94
      %s97 = sphi 0, %s96
      %s111 = sphi 0, %s97
      %s115 = sphi 0, %s115
      %s117 = sphi 0, %s115
      %s118 = sphi 0, %s117
      %s132 = sphi 0, %s118
      %s136 = sphi 0, %s136
      %s138 = sphi 0, %s136
      %s139 = sphi 0, %s138
      %s153 = sphi 0, %s139
      %s157 = sphi 0, %s157
      %s159 = sphi 0, %s157
      %s160 = sphi 0, %s159
      %s174 = sphi 0, %s160
      %s178 = sphi 0, %s178
      %s180 = sphi 0, %s178
      %s181 = sphi 0, %s180
      %s195 = sphi 0, %s181
      %s199 = sphi 0, %s199
      %s201 = sphi 0, %s199
      %s202 = sphi 0, %s201
      %s216 = sphi 0, %s202
      %s222 = sphi 0, %s224
      %s225 = sphi 0, %s222
      %s226 = sphi 0, %s225
      %s242 = sphi 0, %s226
    $region4: #{tpu_custom_call.1} parent=1 // loop_header_branch
      %21 = sbr.rel (%p19) target = $region8
    $region5: #{tpu_custom_call.1} parent=1 // loop_body
      %s23 = ssub.s32 %s18, 1
      %s24 = ssub.s32 %s18, 2
      %s25 = sadd.s32 %s18, 1
      %s26 = ssub.s32 %s18, %s25
      %p27 = scmp.eq.s32.totalorder %s26, 0
      %s29 = sadd.s32 %s28, 1
      %s30 = scalar_select %p27, %s28, %s29
      %p33 = pneg %p27
      %p34 = scmp.eq.s32.totalorder %s18, 1
      %p35 = por %p33, %p34
      %p36 = scmp.ne.s32.totalorder %s28, %s31
      %p37 = scmp.eq.s32.totalorder %s18, 0
      %p38 = por %p36, %p37
      %p39 = scmp.ne.s32.totalorder %s28, %s31
      %p40 = scmp.eq.s32.totalorder %s23, 1
      %p41 = por %p39, %p40
      %p42 = scmp.ne.s32.totalorder %s31, %s32
      %p43 = scmp.eq.s32.totalorder %s23, 0
      %p44 = por %p42, %p43
      %p45 = scmp.ne.s32.totalorder %s31, %s32
      %p46 = scmp.eq.s32.totalorder %s24, 1
      %p47 = por %p45, %p46
      %p49 = scmp.ne.s32.totalorder %s32, %s48
      %p50 = scmp.eq.s32.totalorder %s24, 0
      %p51 = por %p49, %p50
      %s53 = sadd.s32 %s52, 1
      %p56 = scmp.eq.s32.totalorder %s18, 1
      %p57 = scmp.ne.s32.totalorder %s52, %s54
      %p58 = scmp.eq.s32.totalorder %s18, 0
      %p59 = por %p57, %p58
      %p60 = scmp.ne.s32.totalorder %s52, %s54
      %p61 = scmp.eq.s32.totalorder %s23, 1
      %p62 = por %p60, %p61
      %p63 = scmp.ne.s32.totalorder %s54, %s55
      %p64 = scmp.eq.s32.totalorder %s23, 0
      %p65 = por %p63, %p64
      %p66 = scmp.ne.s32.totalorder %s54, %s55
      %p67 = scmp.eq.s32.totalorder %s24, 1
      %p68 = por %p66, %p67
      %p70 = scmp.ne.s32.totalorder %s55, %s69
      %p71 = scmp.eq.s32.totalorder %s24, 0
      %p72 = por %p70, %p71
      %s74 = sadd.s32 %s73, 1
      %p77 = scmp.eq.s32.totalorder %s18, 1
      %p78 = scmp.ne.s32.totalorder %s73, %s75
      %p79 = scmp.eq.s32.totalorder %s18, 0
      %p80 = por %p78, %p79
      %p81 = scmp.ne.s32.totalorder %s73, %s75
      %p82 = scmp.eq.s32.totalorder %s23, 1
      %p83 = por %p81, %p82
      %p84 = scmp.ne.s32.totalorder %s75, %s76
      %p85 = scmp.eq.s32.totalorder %s23, 0
      %p86 = por %p84, %p85
      %p87 = scmp.ne.s32.totalorder %s75, %s76
      %p88 = scmp.eq.s32.totalorder %s24, 1
      %p89 = por %p87, %p88
      %p91 = scmp.ne.s32.totalorder %s76, %s90
      %p92 = scmp.eq.s32.totalorder %s24, 0
      %p93 = por %p91, %p92
      %s95 = sadd.s32 %s94, 1
      %p98 = scmp.eq.s32.totalorder %s18, 1
      %p99 = scmp.ne.s32.totalorder %s94, %s96
      %p100 = scmp.eq.s32.totalorder %s18, 0
      %p101 = por %p99, %p100
      %p102 = scmp.ne.s32.totalorder %s94, %s96
      %p103 = scmp.eq.s32.totalorder %s23, 1
      %p104 = por %p102, %p103
      %p105 = scmp.ne.s32.totalorder %s96, %s97
      %p106 = scmp.eq.s32.totalorder %s23, 0
      %p107 = por %p105, %p106
      %p108 = scmp.ne.s32.totalorder %s96, %s97
      %p109 = scmp.eq.s32.totalorder %s24, 1
      %p110 = por %p108, %p109
      %p112 = scmp.ne.s32.totalorder %s97, %s111
      %p113 = scmp.eq.s32.totalorder %s24, 0
      %p114 = por %p112, %p113
      %s116 = sadd.s32 %s115, 1
      %p119 = scmp.eq.s32.totalorder %s18, 1
      %p120 = scmp.ne.s32.totalorder %s115, %s117
      %p121 = scmp.eq.s32.totalorder %s18, 0
      %p122 = por %p120, %p121
      %p123 = scmp.ne.s32.totalorder %s115, %s117
      %p124 = scmp.eq.s32.totalorder %s23, 1
      %p125 = por %p123, %p124
      %p126 = scmp.ne.s32.totalorder %s117, %s118
      %p127 = scmp.eq.s32.totalorder %s23, 0
      %p128 = por %p126, %p127
      %p129 = scmp.ne.s32.totalorder %s117, %s118
      %p130 = scmp.eq.s32.totalorder %s24, 1
      %p131 = por %p129, %p130
      %p133 = scmp.ne.s32.totalorder %s118, %s132
      %p134 = scmp.eq.s32.totalorder %s24, 0
      %p135 = por %p133, %p134
      %s137 = sadd.s32 %s136, 1
      %p140 = scmp.eq.s32.totalorder %s18, 1
      %p141 = scmp.ne.s32.totalorder %s136, %s138
      %p142 = scmp.eq.s32.totalorder %s18, 0
      %p143 = por %p141, %p142
      %p144 = scmp.ne.s32.totalorder %s136, %s138
      %p145 = scmp.eq.s32.totalorder %s23, 1
      %p146 = por %p144, %p145
      %p147 = scmp.ne.s32.totalorder %s138, %s139
      %p148 = scmp.eq.s32.totalorder %s23, 0
      %p149 = por %p147, %p148
      %p150 = scmp.ne.s32.totalorder %s138, %s139
      %p151 = scmp.eq.s32.totalorder %s24, 1
      %p152 = por %p150, %p151
      %p154 = scmp.ne.s32.totalorder %s139, %s153
      %p155 = scmp.eq.s32.totalorder %s24, 0
      %p156 = por %p154, %p155
      %s158 = sadd.s32 %s157, 1
      %p161 = scmp.eq.s32.totalorder %s18, 1
      %p162 = scmp.ne.s32.totalorder %s157, %s159
      %p163 = scmp.eq.s32.totalorder %s18, 0
      %p164 = por %p162, %p163
      %p165 = scmp.ne.s32.totalorder %s157, %s159
      %p166 = scmp.eq.s32.totalorder %s23, 1
      %p167 = por %p165, %p166
      %p168 = scmp.ne.s32.totalorder %s159, %s160
      %p169 = scmp.eq.s32.totalorder %s23, 0
      %p170 = por %p168, %p169
      %p171 = scmp.ne.s32.totalorder %s159, %s160
      %p172 = scmp.eq.s32.totalorder %s24, 1
      %p173 = por %p171, %p172
      %p175 = scmp.ne.s32.totalorder %s160, %s174
      %p176 = scmp.eq.s32.totalorder %s24, 0
      %p177 = por %p175, %p176
      %s179 = sadd.s32 %s178, 1
      %p182 = scmp.eq.s32.totalorder %s18, 1
      %p183 = scmp.ne.s32.totalorder %s178, %s180
      %p184 = scmp.eq.s32.totalorder %s18, 0
      %p185 = por %p183, %p184
      %p186 = scmp.ne.s32.totalorder %s178, %s180
      %p187 = scmp.eq.s32.totalorder %s23, 1
      %p188 = por %p186, %p187
      %p189 = scmp.ne.s32.totalorder %s180, %s181
      %p190 = scmp.eq.s32.totalorder %s23, 0
      %p191 = por %p189, %p190
      %p192 = scmp.ne.s32.totalorder %s180, %s181
      %p193 = scmp.eq.s32.totalorder %s24, 1
      %p194 = por %p192, %p193
      %p196 = scmp.ne.s32.totalorder %s181, %s195
      %p197 = scmp.eq.s32.totalorder %s24, 0
      %p198 = por %p196, %p197
      %s200 = sadd.s32 %s199, 1
      %p203 = scmp.eq.s32.totalorder %s18, 1
      %p204 = scmp.ne.s32.totalorder %s199, %s201
      %p205 = scmp.eq.s32.totalorder %s18, 0
      %p206 = por %p204, %p205
      %p207 = scmp.ne.s32.totalorder %s199, %s201
      %p208 = scmp.eq.s32.totalorder %s23, 1
      %p209 = por %p207, %p208
      %p210 = scmp.ne.s32.totalorder %s201, %s202
      %p211 = scmp.eq.s32.totalorder %s23, 0
      %p212 = por %p210, %p211
      %p213 = scmp.ne.s32.totalorder %s201, %s202
      %p214 = scmp.eq.s32.totalorder %s24, 1
      %p215 = por %p213, %p214
      %p217 = scmp.ne.s32.totalorder %s202, %s216
      %p218 = scmp.eq.s32.totalorder %s24, 0
      %p219 = por %p217, %p218
      %s220 = ssub.s32 %s18, %s25
      %p221 = scmp.eq.s32.totalorder %s220, 0
      %s223 = sadd.s32 %s222, 1
      %s224 = scalar_select %p221, %s222, %s223
      %p227 = pneg %p221
      %p228 = scmp.eq.s32.totalorder %s18, 1
      %p229 = por %p227, %p228
      %p230 = scmp.ne.s32.totalorder %s222, %s225
      %p231 = scmp.eq.s32.totalorder %s18, 0
      %p232 = por %p230, %p231
      %p233 = scmp.ne.s32.totalorder %s222, %s225
      %p234 = scmp.eq.s32.totalorder %s23, 1
      %p235 = por %p233, %p234
      %p236 = scmp.ne.s32.totalorder %s225, %s226
      %p237 = scmp.eq.s32.totalorder %s23, 0
      %p238 = por %p236, %p237
      %p239 = scmp.ne.s32.totalorder %s225, %s226
      %p240 = scmp.eq.s32.totalorder %s24, 1
      %p241 = por %p239, %p240
      %p243 = scmp.ne.s32.totalorder %s226, %s242
      %p244 = scmp.eq.s32.totalorder %s24, 0
      %p245 = por %p243, %p244
      %p246 = scmp.le.s32.totalorder 1, %s18
      %p247 = scmp.lt.s32.totalorder %s18, 3
      %p248 = pnand %p246, %p247
      %p249 = pneg %p248
      // Predicated region
      $region9: #{tpu_custom_call.1} parent=5 // pred_check
        _
      $region10: #{tpu_custom_call.1} parent=5 // pred_check_branch
        %251 = sbr.rel (%p248) target = $region12
      $region11: #{tpu_custom_call.1} parent=5 // pred_region
        %s252 = ssub.s32 %s18, 1
        // Predicated region
        $region13: #{tpu_custom_call.1} parent=11 // pred_check
          %p253 = pneg %p65
        $region14: #{tpu_custom_call.1} parent=11 // pred_check_branch
          %255 = sbr.rel (%p253) target = $region16
        $region15: #{tpu_custom_call.1} parent=11 // pred_region
          _
        $region16: #{tpu_custom_call.1} parent=11 // pred_fallthru
          _
        // Predicated region
        $region17: #{tpu_custom_call.1} parent=11 // pred_check
          %p256 = pneg %p86
        $region18: #{tpu_custom_call.1} parent=11 // pred_check_branch
          %258 = sbr.rel (%p256) target = $region20
        $region19: #{tpu_custom_call.1} parent=11 // pred_region
          _
        $region20: #{tpu_custom_call.1} parent=11 // pred_fallthru
          _
        // Predicated region
        $region21: #{tpu_custom_call.1} parent=11 // pred_check
          %p259 = pneg %p107
        $region22: #{tpu_custom_call.1} parent=11 // pred_check_branch
          %261 = sbr.rel (%p259) target = $region24
        $region23: #{tpu_custom_call.1} parent=11 // pred_region
          _
        $region24: #{tpu_custom_call.1} parent=11 // pred_fallthru
          _
        // Predicated region
        $region25: #{tpu_custom_call.1} parent=11 // pred_check
          %p262 = pneg %p128
        $region26: #{tpu_custom_call.1} parent=11 // pred_check_branch
          %264 = sbr.rel (%p262) target = $region28
        $region27: #{tpu_custom_call.1} parent=11 // pred_region
          _
        $region28: #{tpu_custom_call.1} parent=11 // pred_fallthru
          _
        // Predicated region
        $region29: #{tpu_custom_call.1} parent=11 // pred_check
          %p265 = pneg %p149
        $region30: #{tpu_custom_call.1} parent=11 // pred_check_branch
          %267 = sbr.rel (%p265) target = $region32
        $region31: #{tpu_custom_call.1} parent=11 // pred_region
          _
        $region32: #{tpu_custom_call.1} parent=11 // pred_fallthru
          _
        // Predicated region
        $region33: #{tpu_custom_call.1} parent=11 // pred_check
          %p268 = pneg %p170
        $region34: #{tpu_custom_call.1} parent=11 // pred_check_branch
          %270 = sbr.rel (%p268) target = $region36
        $region35: #{tpu_custom_call.1} parent=11 // pred_region
          _
        $region36: #{tpu_custom_call.1} parent=11 // pred_fallthru
          _
        // Predicated region
        $region37: #{tpu_custom_call.1} parent=11 // pred_check
          %p271 = pneg %p191
        $region38: #{tpu_custom_call.1} parent=11 // pred_check_branch
          %273 = sbr.rel (%p271) target = $region40
        $region39: #{tpu_custom_call.1} parent=11 // pred_region
          _
        $region40: #{tpu_custom_call.1} parent=11 // pred_fallthru
          _
        // Predicated region
        $region41: #{tpu_custom_call.1} parent=11 // pred_check
          %p274 = pneg %p212
        $region42: #{tpu_custom_call.1} parent=11 // pred_check_branch
          %276 = sbr.rel (%p274) target = $region44
        $region43: #{tpu_custom_call.1} parent=11 // pred_region
          _
        $region44: #{tpu_custom_call.1} parent=11 // pred_fallthru
          _
      $region12: #{tpu_custom_call.1} parent=5 // pred_fallthru
        _
      %p277 = scmp.lt.s32.totalorder %s18, 2
      // Predicated region
      $region45: #{tpu_custom_call.1} parent=5 // pred_check
        %p278 = pneg %p277
      $region46: #{tpu_custom_call.1} parent=5 // pred_check_branch
        %280 = sbr.rel (%p278) target = $region48
      $region47: #{tpu_custom_call.1} parent=5 // pred_region
        // Predicated region
        $region49: #{tpu_custom_call.1} parent=47 // pred_check
          %p281 = pneg %p38
        $region50: #{tpu_custom_call.1} parent=47 // pred_check_branch
          %283 = sbr.rel (%p281) target = $region52
        $region51: #{tpu_custom_call.1} parent=47 // pred_region
          %p284 = scmp.lt.s32.totalorder %s18, 1
          %s285 = scalar_select %p284, %s18, 1
          %s286 = smul.addr %s285, 4
          %s287 = smul.addr %s286, 8
          %s288 = scalar_lea.vmem %s0, %s287
        $region52: #{tpu_custom_call.1} parent=47 // pred_fallthru
          _
      $region48: #{tpu_custom_call.1} parent=5 // pred_fallthru
        _
      %p289 = scmp.le.s32.totalorder 1, %s18
      %p290 = scmp.lt.s32.totalorder %s18, 3
      %p291 = pnand %p289, %p290
      %p292 = pneg %p291
      // Predicated region
      $region53: #{tpu_custom_call.1} parent=5 // pred_check
        _
      $region54: #{tpu_custom_call.1} parent=5 // pred_check_branch
        %294 = sbr.rel (%p291) target = $region56
      $region55: #{tpu_custom_call.1} parent=5 // pred_region
        %s295 = ssub.s32 %s18, 1
        %p296 = scmp.lt.s32.totalorder %s23, 1
        %s297 = scalar_select %p296, %s23, 1
        %s298 = smul.addr %s297, 4
        %s299 = smul.addr %s298, 8
        %s300 = scalar_lea.vmem %s0, %s299
        %p301 = pneg %p44
        %p302 = pneg %p41
        %p303 = pneg %p65
        %p304 = pneg %p62
        %p305 = pneg %p86
        %p306 = pneg %p83
        %p307 = pneg %p107
        %p308 = pneg %p104
        %p309 = pneg %p128
        %p310 = pneg %p125
        %p311 = pneg %p149
        %p312 = pneg %p146
        %p313 = pneg %p170
        %p314 = pneg %p167
        %p315 = pneg %p191
        %p316 = pneg %p188
        %p317 = pneg %p212
        %p318 = pneg %p209
        %p319 = pneg %p238
        %p320 = pneg %p235
        %s321 = sand.u32 %s225, 1
        %s322 = scalar_lea.sflag [#allocation3], %s321
        %s323 = sand.u32 %s225, 1
        %s324 = smul.addr %s323, 16
        %s325 = scalar_lea.vmem [#allocation2], %s324
        %p326 = scmp.lt.s32.totalorder %s23, 1
        %s327 = scalar_select %p326, %s23, 1
        %s328 = smul.addr %s327, 4
        %s329 = smul.addr %s328, 8
        %s330 = scalar_lea.vmem %s0, %s329
        %v332 = vld [vmem:[%s1] sm:$0xf]
        %v333 = vld [vmem:[%s2] sm:$0xf]
        %v334 = vld [vmem:[%s3] sm:$0xff]
        %v335 = vld [vmem:[%s3 + $0x8] sm:$0xff]
        %v336 = vld [vmem:[%s4] sm:$0xff]
        %v337 = vld [vmem:[%s4 + $0x8] sm:$0xff]
        %v338 = vld [vmem:[%s5] sm:$0xf]
        %v339 = vld [vmem:[%s6] sm:$0xff]
        %v340 = vld [vmem:[%s6 + $0x8] sm:$0xff]
        %v341 = vld [vmem:[%s7] sm:$0xf]
        %v342 = vld [vmem:[%s7 + $0x4] sm:$0xf]
        %v343 = vld [vmem:[%s7 + $0x8] sm:$0xf]
        %v344 = vld [vmem:[%s7 + $0xc] sm:$0xf]
        %v345 = vld [vmem:[%s7 + $0x10] sm:$0xf]
        %v346 = vld [vmem:[%s7 + $0x14] sm:$0xf]
        %v347 = vld [vmem:[%s7 + $0x18] sm:$0xf]
        %v348 = vld [vmem:[%s7 + $0x1c] sm:$0xf]
        %v349 = vld [vmem:[%s7 + $0x20] sm:$0xf]
        %v350 = vld [vmem:[%s8] sm:$0xff]
        %v351 = vlaneseq
        %v352 = vand.u32 %v351, 127
        %v353 = vadd.s32 %v352, 128
        %v354 = vshra.s32 %v352, 4
        %v355 = vshra.s32 %v353, 4
        %v356 = vand.u32 %v352, 15
        %v357 = vand.u32 %v353, 15
        %vm358 = vcmp.ge.s32.totalorder %v354, 1
        %vm359 = vcmp.ge.s32.totalorder %v355, 1
        %vm360 = vcmp.le.s32.totalorder %v354, 14
        %vm361 = vcmp.le.s32.totalorder %v355, 14
        %vm362 = vcmp.ge.s32.totalorder %v356, 1
        %vm363 = vcmp.ge.s32.totalorder %v357, 1
        %vm364 = vcmp.le.s32.totalorder %v356, 14
        %vm365 = vcmp.le.s32.totalorder %v357, 14
        %vm366 = vmand %vm358, %vm362
        %vm367 = vmand %vm359, %vm363
        %v368 = vsel %vm366, 1, 0
        %v369 = vsel %vm367, 1, 0
        %v370 = vcvt.s32.f32 %v368
        %v371 = vcvt.s32.f32 %v369
        %v372 = vsel %vm358, 1, 0
        %v373 = vsel %vm359, 1, 0
        %v374 = vcvt.s32.f32 %v372
        %v375 = vcvt.s32.f32 %v373
        %vm376 = vmand %vm358, %vm364
        %vm377 = vmand %vm359, %vm365
        %v378 = vsel %vm376, 1, 0
        %v379 = vsel %vm377, 1, 0
        %v380 = vcvt.s32.f32 %v378
        %v381 = vcvt.s32.f32 %v379
        %v382 = vsel %vm362, 1, 0
        %v383 = vsel %vm363, 1, 0
        %v384 = vcvt.s32.f32 %v382
        %v385 = vcvt.s32.f32 %v383
        %v386 = vsel %vm364, 1, 0
        %v387 = vsel %vm365, 1, 0
        %v388 = vcvt.s32.f32 %v386
        %v389 = vcvt.s32.f32 %v387
        %vm390 = vmand %vm360, %vm362
        %vm391 = vmand %vm361, %vm363
        %v392 = vsel %vm390, 1, 0
        %v393 = vsel %vm391, 1, 0
        %v394 = vcvt.s32.f32 %v392
        %v395 = vcvt.s32.f32 %v393
        %v396 = vsel %vm360, 1, 0
        %v397 = vsel %vm361, 1, 0
        %v398 = vcvt.s32.f32 %v396
        %v399 = vcvt.s32.f32 %v397
        %vm400 = vmand %vm360, %vm364
        %vm401 = vmand %vm361, %vm365
        %v402 = vsel %vm400, 1, 0
        %v403 = vsel %vm401, 1, 0
        %v404 = vcvt.s32.f32 %v402
        %v405 = vcvt.s32.f32 %v403
        %v406 = vld [vmem:[%s330] sm:$0xff]
        %v407 = vld [vmem:[%s330 + $0x8] sm:$0xff]
        %v408 = vld [vmem:[%s330 + $0x10] sm:$0xff]
        %v409 = vld [vmem:[%s330 + $0x18] sm:$0xff]
        %v410 = vadd.f32 %v406, %v407
        %411 = vadd.xlane.f32.xlu0 %v410
        %v412 = vpop.xlane.xlu0 %411
        %v413 = vadd.f32 %v408, %v409
        %414 = vadd.xlane.f32.xlu0 %v413
        %v415 = vpop.xlane.xlu0 %414
        %v416 = vrcp.pop 256.0
        %v417 = vmul.f32 %v412, %v416
        %v418 = vmul.f32 %v415, %v416
        %v419 = vmax.f32 %v406, %v407
        %420 = vmax.xlane.f32.xlu0 %v419
        %v421 = vpop.xlane.xlu0 %420
        %v422 = vmax.f32 %v408, %v409
        %423 = vmax.xlane.f32.xlu0 %v422
        %v424 = vpop.xlane.xlu0 %423
        %vm425 = vcmp.eq.s32.totalorder %v352, 0
        %v426 = vsel %vm425, %v417, %v421
        %v427 = vsel %vm425, %v418, %v424
        %429 = vset.pattern.permute.xlu0 0
        %430 = vperm.xlu0 %429, %v333
        %v431 = vpop.permute.xlu0 %430
        %vm433 = vcmask 130048
        %v435 = vsel %vm433, %v332, 0
        %437 = vmatprep.subr.mxu0 0.0
        %438 = vmatpush1.msra.mxu0 %v426
        %439 = vmatprep.subr.mxu0 0.0
        %440 = vmatpush1.msra.mxu0 %v427
        %441 = vmatprep.subr.mxu0 0.0
        %442 = vmatpush1.msra.mxu0 0.0
        %443 = vmatprep.subr.mxu0 0.0
        %444 = vmatpush1.msra.mxu0 0.0
        %445 = vmatprep.subr.mxu0 0.0
        %446 = vmatpush1.msra.mxu0 0.0
        %447 = vmatprep.subr.mxu0 0.0
        %448 = vmatpush1.msra.mxu0 0.0
        %449 = vmatprep.subr.mxu0 0.0
        %450 = vmatpush1.msra.mxu0 0.0
        %451 = vmatprep.subr.mxu0 0.0
        %452 = vmatpush1.msra.mxu0 0.0
        %453 = vmatprep.subr.mxu0 0.0
        %454 = vmatpush1.msra.mxu0 0.0
        %455 = vmatprep.subr.mxu0 0.0
        %456 = vmatpush1.msra.mxu0 0.0
        %457 = vmatprep.subr.mxu0 0.0
        %458 = vmatpush1.msra.mxu0 0.0
        %459 = vmatprep.subr.mxu0 0.0
        %460 = vmatpush1.msra.mxu0 0.0
        %461 = vmatprep.subr.mxu0 0.0
        %462 = vmatpush1.msra.mxu0 0.0
        %463 = vmatprep.subr.mxu0 0.0
        %464 = vmatpush1.msra.mxu0 0.0
        %465 = vmatprep.subr.mxu0 0.0
        %466 = vmatpush1.msra.mxu0 0.0
        %467 = vmatprep.subr.mxu0 0.0
        %468 = vmatpush1.msra.mxu0 0.0
        %469 = vmatprep.subr.mxu0 0.0
        %470 = vmatpush1.msra.mxu0 0.0
        %471 = vmatprep.subr.mxu0 0.0
        %472 = vmatpush1.msra.mxu0 0.0
        %473 = vmatprep.subr.mxu0 0.0
        %474 = vmatpush1.msra.mxu0 0.0
        %475 = vmatprep.subr.mxu0 0.0
        %476 = vmatpush1.msra.mxu0 0.0
        %477 = vmatprep.subr.mxu0 0.0
        %478 = vmatpush1.msra.mxu0 0.0
        %479 = vmatprep.subr.mxu0 0.0
        %480 = vmatpush1.msra.mxu0 0.0
        %481 = vmatprep.subr.mxu0 0.0
        %482 = vmatpush1.msra.mxu0 0.0
        %483 = vmatprep.subr.mxu0 0.0
        %484 = vmatpush1.msra.mxu0 0.0
        %485 = vmatprep.subr.mxu0 0.0
        %486 = vmatpush1.msra.mxu0 0.0
        %487 = vmatprep.subr.mxu0 0.0
        %488 = vmatpush1.msra.mxu0 0.0
        %489 = vmatprep.subr.mxu0 0.0
        %490 = vmatpush1.msra.mxu0 0.0
        %491 = vmatprep.subr.mxu0 0.0
        %492 = vmatpush1.msra.mxu0 0.0
        %493 = vmatprep.subr.mxu0 0.0
        %494 = vmatpush1.msra.mxu0 0.0
        %495 = vmatprep.subr.mxu0 0.0
        %496 = vmatpush1.msra.mxu0 0.0
        %497 = vmatprep.subr.mxu0 0.0
        %498 = vmatpush1.msra.mxu0 0.0
        %499 = vmatprep.subr.mxu0 0.0
        %500 = vmatpush1.msra.mxu0 0.0
        %501 = vmatprep.mubr.f32.mxu0 0.0
        %502 = vmatmul.mubr.f32.gmra.mrb[0].mxu0 %v435
        %v503 = vpop.f32.mrb[0].mxu0
        %v504 = vadd.f32 %v431, %v503
        %v505 = vpop.f32.mrb[0].mxu0
        %506 = vdwg.mxu0
        %v507 = vmax.f32 %v504, 0.0
        %509 = vset.pattern.permute.xlu0 0
        %510 = vperm.xlu0 %509, %v336
        %v511 = vpop.permute.xlu0 %510
        %514 = vset.pattern.permute.xlu0 0
        %515 = vperm.xlu0 %514, %v337
        %v516 = vpop.permute.xlu0 %515
        %vm518 = vcmask 31744
        %v520 = vsel %vm518, %v334, 0
        %v523 = vsel %vm518, %v335, 0
        %vm525 = vcmask 1043456
        %v527 = vsel %vm525, %v507, 0
        %529 = vmatprep.subr.mxu0 0.0
        %530 = vmatpush1.msra.mxu0 %v527
        %531 = vmatprep.subr.mxu0 0.0
        %532 = vmatpush1.msra.mxu0 0.0
        %533 = vmatprep.subr.mxu0 0.0
        %534 = vmatpush1.msra.mxu0 0.0
        %535 = vmatprep.subr.mxu0 0.0
        %536 = vmatpush1.msra.mxu0 0.0
        %537 = vmatprep.subr.mxu0 0.0
        %538 = vmatpush1.msra.mxu0 0.0
        %539 = vmatprep.subr.mxu0 0.0
        %540 = vmatpush1.msra.mxu0 0.0
        %541 = vmatprep.subr.mxu0 0.0
        %542 = vmatpush1.msra.mxu0 0.0
        %543 = vmatprep.subr.mxu0 0.0
        %544 = vmatpush1.msra.mxu0 0.0
        %545 = vmatprep.subr.mxu0 0.0
        %546 = vmatpush1.msra.mxu0 0.0
        %547 = vmatprep.subr.mxu0 0.0
        %548 = vmatpush1.msra.mxu0 0.0
        %549 = vmatprep.subr.mxu0 0.0
        %550 = vmatpush1.msra.mxu0 0.0
        %551 = vmatprep.subr.mxu0 0.0
        %552 = vmatpush1.msra.mxu0 0.0
        %553 = vmatprep.subr.mxu0 0.0
        %554 = vmatpush1.msra.mxu0 0.0
        %555 = vmatprep.subr.mxu0 0.0
        %556 = vmatpush1.msra.mxu0 0.0
        %557 = vmatprep.subr.mxu0 0.0
        %558 = vmatpush1.msra.mxu0 0.0
        %559 = vmatprep.subr.mxu0 0.0
        %560 = vmatpush1.msra.mxu0 0.0
        %561 = vmatprep.subr.mxu0 0.0
        %562 = vmatpush1.msra.mxu0 0.0
        %563 = vmatprep.subr.mxu0 0.0
        %564 = vmatpush1.msra.mxu0 0.0
        %565 = vmatprep.subr.mxu0 0.0
        %566 = vmatpush1.msra.mxu0 0.0
        %567 = vmatprep.subr.mxu0 0.0
        %568 = vmatpush1.msra.mxu0 0.0
        %569 = vmatprep.subr.mxu0 0.0
        %570 = vmatpush1.msra.mxu0 0.0
        %571 = vmatprep.subr.mxu0 0.0
        %572 = vmatpush1.msra.mxu0 0.0
        %573 = vmatprep.subr.mxu0 0.0
        %574 = vmatpush1.msra.mxu0 0.0
        %575 = vmatprep.subr.mxu0 0.0
        %576 = vmatpush1.msra.mxu0 0.0
        %577 = vmatprep.subr.mxu0 0.0
        %578 = vmatpush1.msra.mxu0 0.0
        %579 = vmatprep.subr.mxu0 0.0
        %580 = vmatpush1.msra.mxu0 0.0
        %581 = vmatprep.subr.mxu0 0.0
        %582 = vmatpush1.msra.mxu0 0.0
        %583 = vmatprep.subr.mxu0 0.0
        %584 = vmatpush1.msra.mxu0 0.0
        %585 = vmatprep.subr.mxu0 0.0
        %586 = vmatpush1.msra.mxu0 0.0
        %587 = vmatprep.subr.mxu0 0.0
        %588 = vmatpush1.msra.mxu0 0.0
        %589 = vmatprep.subr.mxu0 0.0
        %590 = vmatpush1.msra.mxu0 0.0
        %591 = vmatprep.subr.mxu0 0.0
        %592 = vmatpush1.msra.mxu0 0.0
        %593 = vmatprep.mubr.f32.mxu0 0.0
        %594 = vmatmul.mubr.f32.gmra.mrb[0].mxu0 %v520
        %v595 = vpop.f32.mrb[0].mxu0
        %v596 = vadd.f32 %v511, %v595
        %v597 = vpop.f32.mrb[0].mxu0
        %598 = vmatprep.mubr.f32.mxu0 0.0
        %599 = vmatmul.mubr.f32.gmra.mrb[0].mxu0 %v523
        %v600 = vpop.f32.mrb[0].mxu0
        %v601 = vadd.f32 %v516, %v600
        %v602 = vpop.f32.mrb[0].mxu0
        %603 = vdwg.mxu0
        %vm604 = vcmask 15360
        %v605 = vsel %vm604, %v596, 0.0
        %606 = vadd.xlane.f32.xlu0 %v605
        %v607 = vpop.xlane.xlu0 %606
        %v608 = vsel %vm604, %v601, 0.0
        %609 = vadd.xlane.f32.xlu0 %v608
        %v610 = vpop.xlane.xlu0 %609
        %v611 = vsub.f32 0.0, %v607
        %v612 = vsub.f32 0.0, %v610
        %v613 = vmul.f32 %v611, 1.442695
        %v614 = vpow.pop %v613
        %v615 = vmul.f32 %v612, 1.442695
        %v616 = vpow.pop %v615
        %v617 = vadd.f32 %v614, 1.0
        %v618 = vadd.f32 %v616, 1.0
        %v619 = vrcp.pop %v617
        %v620 = vrcp.pop %v618
        %v621 = vmul.f32 %v406, %v619
        %v622 = vmul.f32 %v407, %v619
        %v623 = vmul.f32 %v408, %v620
        %v624 = vmul.f32 %v409, %v620
        %v626 = vsel %vm433, %v338, 0
        %628 = vmatprep.subr.mxu0 %v622
        %629 = vmatpush1.msra.mxu0 %v621
        %630 = vmatprep.subr.mxu0 %v624
        %631 = vmatpush1.msra.mxu0 %v623
        %632 = vmatprep.subr.mxu0 0.0
        %633 = vmatpush1.msra.mxu0 0.0
        %634 = vmatprep.subr.mxu0 0.0
        %635 = vmatpush1.msra.mxu0 0.0
        %636 = vmatprep.subr.mxu0 0.0
        %637 = vmatpush1.msra.mxu0 0.0
        %638 = vmatprep.subr.mxu0 0.0
        %639 = vmatpush1.msra.mxu0 0.0
        %640 = vmatprep.subr.mxu0 0.0
        %641 = vmatpush1.msra.mxu0 0.0
        %642 = vmatprep.subr.mxu0 0.0
        %643 = vmatpush1.msra.mxu0 0.0
        %644 = vmatprep.subr.mxu0 0.0
        %645 = vmatpush1.msra.mxu0 0.0
        %646 = vmatprep.subr.mxu0 0.0
        %647 = vmatpush1.msra.mxu0 0.0
        %648 = vmatprep.subr.mxu0 0.0
        %649 = vmatpush1.msra.mxu0 0.0
        %650 = vmatprep.subr.mxu0 0.0
        %651 = vmatpush1.msra.mxu0 0.0
        %652 = vmatprep.subr.mxu0 0.0
        %653 = vmatpush1.msra.mxu0 0.0
        %654 = vmatprep.subr.mxu0 0.0
        %655 = vmatpush1.msra.mxu0 0.0
        %656 = vmatprep.subr.mxu0 0.0
        %657 = vmatpush1.msra.mxu0 0.0
        %658 = vmatprep.subr.mxu0 0.0
        %659 = vmatpush1.msra.mxu0 0.0
        %660 = vmatprep.subr.mxu0 0.0
        %661 = vmatpush1.msra.mxu0 0.0
        %662 = vmatprep.subr.mxu0 0.0
        %663 = vmatpush1.msra.mxu0 0.0
        %664 = vmatprep.subr.mxu0 0.0
        %665 = vmatpush1.msra.mxu0 0.0
        %666 = vmatprep.subr.mxu0 0.0
        %667 = vmatpush1.msra.mxu0 0.0
        %668 = vmatprep.subr.mxu0 0.0
        %669 = vmatpush1.msra.mxu0 0.0
        %670 = vmatprep.subr.mxu0 0.0
        %671 = vmatpush1.msra.mxu0 0.0
        %672 = vmatprep.subr.mxu0 0.0
        %673 = vmatpush1.msra.mxu0 0.0
        %674 = vmatprep.subr.mxu0 0.0
        %675 = vmatpush1.msra.mxu0 0.0
        %676 = vmatprep.subr.mxu0 0.0
        %677 = vmatpush1.msra.mxu0 0.0
        %678 = vmatprep.subr.mxu0 0.0
        %679 = vmatpush1.msra.mxu0 0.0
        %680 = vmatprep.subr.mxu0 0.0
        %681 = vmatpush1.msra.mxu0 0.0
        %682 = vmatprep.subr.mxu0 0.0
        %683 = vmatpush1.msra.mxu0 0.0
        %684 = vmatprep.subr.mxu0 0.0
        %685 = vmatpush1.msra.mxu0 0.0
        %686 = vmatprep.subr.mxu0 0.0
        %687 = vmatpush1.msra.mxu0 0.0
        %688 = vmatprep.subr.mxu0 0.0
        %689 = vmatpush1.msra.mxu0 0.0
        %690 = vmatprep.subr.mxu0 0.0
        %691 = vmatpush1.msra.mxu0 0.0
        %692 = vmatprep.mubr.f32.mxu0 0.0
        %693 = vmatmul.mubr.f32.gmra.mrb[0].mxu0 %v626
        %v694 = vpop.f32.mrb[0].mxu0
        %v695 = vadd.f32 0.0, %v694
        %v696 = vpop.f32.mrb[0].mxu0
        %v697 = vadd.f32 0.0, %v696
        %698 = vdwg.mxu0
        %v699 = vmax.f32 %v695, 0.0
        %v700 = vmax.f32 %v697, 0.0
        %v702 = vsel %vm518, %v339, 0
        %v705 = vsel %vm518, %v340, 0
        %v708 = vsel %vm525, %v699, 0
        %v711 = vsel %vm525, %v700, 0
        %713 = vmatprep.subr.mxu0 %v711
        %714 = vmatpush1.msra.mxu0 %v708
        %715 = vmatprep.subr.mxu0 0.0
        %716 = vmatpush1.msra.mxu0 0.0
        %717 = vmatprep.subr.mxu0 0.0
        %718 = vmatpush1.msra.mxu0 0.0
        %719 = vmatprep.subr.mxu0 0.0
        %720 = vmatpush1.msra.mxu0 0.0
        %721 = vmatprep.subr.mxu0 0.0
        %722 = vmatpush1.msra.mxu0 0.0
        %723 = vmatprep.subr.mxu0 0.0
        %724 = vmatpush1.msra.mxu0 0.0
        %725 = vmatprep.subr.mxu0 0.0
        %726 = vmatpush1.msra.mxu0 0.0
        %727 = vmatprep.subr.mxu0 0.0
        %728 = vmatpush1.msra.mxu0 0.0
        %729 = vmatprep.subr.mxu0 0.0
        %730 = vmatpush1.msra.mxu0 0.0
        %731 = vmatprep.subr.mxu0 0.0
        %732 = vmatpush1.msra.mxu0 0.0
        %733 = vmatprep.subr.mxu0 0.0
        %734 = vmatpush1.msra.mxu0 0.0
        %735 = vmatprep.subr.mxu0 0.0
        %736 = vmatpush1.msra.mxu0 0.0
        %737 = vmatprep.subr.mxu0 0.0
        %738 = vmatpush1.msra.mxu0 0.0
        %739 = vmatprep.subr.mxu0 0.0
        %740 = vmatpush1.msra.mxu0 0.0
        %741 = vmatprep.subr.mxu0 0.0
        %742 = vmatpush1.msra.mxu0 0.0
        %743 = vmatprep.subr.mxu0 0.0
        %744 = vmatpush1.msra.mxu0 0.0
        %745 = vmatprep.subr.mxu0 0.0
        %746 = vmatpush1.msra.mxu0 0.0
        %747 = vmatprep.subr.mxu0 0.0
        %748 = vmatpush1.msra.mxu0 0.0
        %749 = vmatprep.subr.mxu0 0.0
        %750 = vmatpush1.msra.mxu0 0.0
        %751 = vmatprep.subr.mxu0 0.0
        %752 = vmatpush1.msra.mxu0 0.0
        %753 = vmatprep.subr.mxu0 0.0
        %754 = vmatpush1.msra.mxu0 0.0
        %755 = vmatprep.subr.mxu0 0.0
        %756 = vmatpush1.msra.mxu0 0.0
        %757 = vmatprep.subr.mxu0 0.0
        %758 = vmatpush1.msra.mxu0 0.0
        %759 = vmatprep.subr.mxu0 0.0
        %760 = vmatpush1.msra.mxu0 0.0
        %761 = vmatprep.subr.mxu0 0.0
        %762 = vmatpush1.msra.mxu0 0.0
        %763 = vmatprep.subr.mxu0 0.0
        %764 = vmatpush1.msra.mxu0 0.0
        %765 = vmatprep.subr.mxu0 0.0
        %766 = vmatpush1.msra.mxu0 0.0
        %767 = vmatprep.subr.mxu0 0.0
        %768 = vmatpush1.msra.mxu0 0.0
        %769 = vmatprep.subr.mxu0 0.0
        %770 = vmatpush1.msra.mxu0 0.0
        %771 = vmatprep.subr.mxu0 0.0
        %772 = vmatpush1.msra.mxu0 0.0
        %773 = vmatprep.subr.mxu0 0.0
        %774 = vmatpush1.msra.mxu0 0.0
        %775 = vmatprep.subr.mxu0 0.0
        %776 = vmatpush1.msra.mxu0 0.0
        %777 = vmatprep.mubr.f32.mxu0 0.0
        %778 = vmatmul.mubr.f32.gmra.mrb[0].mxu0 %v702
        %v779 = vpop.f32.mrb[0].mxu0
        %v780 = vadd.f32 0.0, %v779
        %v781 = vpop.f32.mrb[0].mxu0
        %v782 = vadd.f32 0.0, %v781
        %783 = vmatprep.mubr.f32.mxu0 0.0
        %784 = vmatmul.mubr.f32.gmra.mrb[0].mxu0 %v705
        %v785 = vpop.f32.mrb[0].mxu0
        %v786 = vadd.f32 0.0, %v785
        %v787 = vpop.f32.mrb[0].mxu0
        %v788 = vadd.f32 0.0, %v787
        %789 = vdwg.mxu0
        %v790 = vmul.f32 %v780, 2.0
        %v791 = vmul.f32 %v782, 2.0
        %v792 = vmul.f32 %v786, 2.0
        %v793 = vmul.f32 %v788, 2.0
        %v794 = vsub.f32 0.0, %v790
        %v795 = vsub.f32 0.0, %v791
        %v796 = vsub.f32 0.0, %v792
        %v797 = vsub.f32 0.0, %v793
        %v798 = vmul.f32 %v794, 1.442695
        %v799 = vpow.pop %v798
        %v800 = vmul.f32 %v795, 1.442695
        %v801 = vpow.pop %v800
        %v802 = vmul.f32 %v796, 1.442695
        %v803 = vpow.pop %v802
        %v804 = vmul.f32 %v797, 1.442695
        %v805 = vpow.pop %v804
        %v806 = vadd.f32 %v799, 1.0
        %v807 = vadd.f32 %v801, 1.0
        %v808 = vadd.f32 %v803, 1.0
        %v809 = vadd.f32 %v805, 1.0
        %v810 = vrcp.pop %v806
        %v811 = vrcp.pop %v807
        %v812 = vrcp.pop %v808
        %v813 = vrcp.pop %v809
        %v814 = vmul.f32 %v621, %v810
        %v815 = vmul.f32 %v622, %v811
        %v816 = vmul.f32 %v623, %v812
        %v817 = vmul.f32 %v624, %v813
        %v818 = vpack.c.bf16 %v816, %v814
        %v819 = vpack.c.bf16 %v817, %v815
        %v829 = vunpack.c.l.b16 %v341
        %v830 = vunpack.c.l.b16 %v342
        %v831 = vunpack.c.l.b16 %v343
        %v832 = vunpack.c.l.b16 %v344
        %v833 = vunpack.c.l.b16 %v345
        %v834 = vunpack.c.l.b16 %v346
        %v835 = vunpack.c.l.b16 %v347
        %v836 = vunpack.c.l.b16 %v348
        %v837 = vunpack.c.l.b16 %v349
        %v838 = vpack.c.b16 %v830, %v829
        %v839 = vpack.c.b16 %v832, %v831
        %v840 = vpack.c.b16 %v834, %v833
        %v841 = vpack.c.b16 %v836, %v835
        %v842 = vpack.c.b16 %v837, %v837
        %v844 = vsel %vm433, %v838, 0
        %v847 = vsel %vm433, %v839, 0
        %v850 = vsel %vm433, %v840, 0
        %v853 = vsel %vm433, %v841, 0
        %v856 = vsel %vm433, %v842, 0
        %858 = vmatprep.subr.bf16.mxu0 %v819
        %859 = vmatpush1.bf16.msra.mxu0 %v818
        %860 = vmatprep.subr.bf16.mxu0 0
        %861 = vmatpush1.bf16.msra.mxu0 0
        %862 = vmatprep.subr.bf16.mxu0 0
        %863 = vmatpush1.bf16.msra.mxu0 0
        %864 = vmatprep.subr.bf16.mxu0 0
        %865 = vmatpush1.bf16.msra.mxu0 0
        %866 = vmatprep.subr.bf16.mxu0 0
        %867 = vmatpush1.bf16.msra.mxu0 0
        %868 = vmatprep.subr.bf16.mxu0 0
        %869 = vmatpush1.bf16.msra.mxu0 0
        %870 = vmatprep.subr.bf16.mxu0 0
        %871 = vmatpush1.bf16.msra.mxu0 0
        %872 = vmatprep.subr.bf16.mxu0 0
        %873 = vmatpush1.bf16.msra.mxu0 0
        %874 = vmatprep.subr.bf16.mxu0 0
        %875 = vmatpush1.bf16.msra.mxu0 0
        %876 = vmatprep.subr.bf16.mxu0 0
        %877 = vmatpush1.bf16.msra.mxu0 0
        %878 = vmatprep.subr.bf16.mxu0 0
        %879 = vmatpush1.bf16.msra.mxu0 0
        %880 = vmatprep.subr.bf16.mxu0 0
        %881 = vmatpush1.bf16.msra.mxu0 0
        %882 = vmatprep.subr.bf16.mxu0 0
        %883 = vmatpush1.bf16.msra.mxu0 0
        %884 = vmatprep.subr.bf16.mxu0 0
        %885 = vmatpush1.bf16.msra.mxu0 0
        %886 = vmatprep.subr.bf16.mxu0 0
        %887 = vmatpush1.bf16.msra.mxu0 0
        %888 = vmatprep.subr.bf16.mxu0 0
        %889 = vmatpush1.bf16.msra.mxu0 0
        %890 = vmatprep.mubr.bf16.mxu0 0
        %891 = vmatmul.mubr.bf16.gmra.mrb[0].mxu0 %v844
        %v892 = vpop.f32.mrb[0].mxu0
        %v893 = vadd.f32 0.0, %v892
        %v894 = vpop.f32.mrb[0].mxu0
        %v895 = vadd.f32 0.0, %v894
        %v896 = vpop.f32.mrb[0].mxu0
        %v897 = vadd.f32 0.0, %v896
        %v898 = vpop.f32.mrb[0].mxu0
        %v899 = vadd.f32 0.0, %v898
        %900 = vmatprep.mubr.bf16.mxu0 0
        %901 = vmatmul.mubr.bf16.gmra.mrb[0].mxu0 %v847
        %v902 = vpop.f32.mrb[0].mxu0
        %v903 = vadd.f32 0.0, %v902
        %v904 = vpop.f32.mrb[0].mxu0
        %v905 = vadd.f32 0.0, %v904
        %v906 = vpop.f32.mrb[0].mxu0
        %v907 = vadd.f32 0.0, %v906
        %v908 = vpop.f32.mrb[0].mxu0
        %v909 = vadd.f32 0.0, %v908
        %910 = vmatprep.mubr.bf16.mxu0 0
        %911 = vmatmul.mubr.bf16.gmra.mrb[0].mxu0 %v850
        %v912 = vpop.f32.mrb[0].mxu0
        %v913 = vadd.f32 0.0, %v912
        %v914 = vpop.f32.mrb[0].mxu0
        %v915 = vadd.f32 0.0, %v914
        %v916 = vpop.f32.mrb[0].mxu0
        %v917 = vadd.f32 0.0, %v916
        %v918 = vpop.f32.mrb[0].mxu0
        %v919 = vadd.f32 0.0, %v918
        %920 = vmatprep.mubr.bf16.mxu0 0
        %921 = vmatmul.mubr.bf16.gmra.mrb[0].mxu0 %v853
        %v922 = vpop.f32.mrb[0].mxu0
        %v923 = vadd.f32 0.0, %v922
        %v924 = vpop.f32.mrb[0].mxu0
        %v925 = vadd.f32 0.0, %v924
        %v926 = vpop.f32.mrb[0].mxu0
        %v927 = vadd.f32 0.0, %v926
        %v928 = vpop.f32.mrb[0].mxu0
        %v929 = vadd.f32 0.0, %v928
        %930 = vmatprep.mubr.bf16.mxu0 0
        %931 = vmatmul.mubr.bf16.gmra.mrb[0].mxu0 %v856
        %v932 = vpop.f32.mrb[0].mxu0
        %v933 = vadd.f32 0.0, %v932
        %v934 = vpop.f32.mrb[0].mxu0
        %v935 = vadd.f32 0.0, %v934
        %v936 = vpop.f32.mrb[0].mxu0
        %v937 = vpop.f32.mrb[0].mxu0
        %938 = vdwg.mxu0
        %939 = vrot.lane.b32.xlu0 %v893, 17
        %v940 = vpop.permute.xlu0 %939
        %941 = vrot.lane.b32.xlu0 %v895, 17
        %v942 = vpop.permute.xlu0 %941
        %vm943 = vcmp.lt.s32.totalorder %v352, 17
        %v944 = vsel %vm943, %v940, %v942
        %v945 = vsel %vm943, %v942, %v940
        %v946 = vmul.f32 %v945, %v370
        %v947 = vmul.f32 %v944, %v371
        %v948 = vadd.f32 %v946, 0.0
        %v949 = vadd.f32 %v947, 0.0
        %950 = vrot.lane.b32.xlu0 %v897, 16
        %v951 = vpop.permute.xlu0 %950
        %952 = vrot.lane.b32.xlu0 %v899, 16
        %v953 = vpop.permute.xlu0 %952
        %vm954 = vcmp.lt.s32.totalorder %v352, 16
        %v955 = vsel %vm954, %v951, %v953
        %v956 = vsel %vm954, %v953, %v951
        %v957 = vmul.f32 %v956, %v374
        %v958 = vmul.f32 %v955, %v375
        %v959 = vadd.f32 %v948, %v957
        %v960 = vadd.f32 %v949, %v958
        %961 = vrot.lane.b32.xlu0 %v903, 15
        %v962 = vpop.permute.xlu0 %961
        %963 = vrot.lane.b32.xlu0 %v905, 15
        %v964 = vpop.permute.xlu0 %963
        %vm965 = vcmp.lt.s32.totalorder %v352, 15
        %v966 = vsel %vm965, %v962, %v964
        %v967 = vsel %vm965, %v964, %v962
        %v968 = vmul.f32 %v967, %v380
        %v969 = vmul.f32 %v966, %v381
        %v970 = vadd.f32 %v959, %v968
        %v971 = vadd.f32 %v960, %v969
        %972 = vrot.lane.b32.xlu0 %v907, 1
        %v973 = vpop.permute.xlu0 %972
        %974 = vrot.lane.b32.xlu0 %v909, 1
        %v975 = vpop.permute.xlu0 %974
        %vm976 = vcmp.lt.s32.totalorder %v352, 1
        %v977 = vsel %vm976, %v973, %v975
        %v978 = vsel %vm976, %v975, %v973
        %v979 = vmul.f32 %v978, %v384
        %v980 = vmul.f32 %v977, %v385
        %v981 = vadd.f32 %v970, %v979
        %v982 = vadd.f32 %v971, %v980
        %v983 = vadd.f32 %v981, %v913
        %v984 = vadd.f32 %v982, %v915
        %985 = vrot.lane.b32.xlu0 %v917, 127
        %v986 = vpop.permute.xlu0 %985
        %987 = vrot.lane.b32.xlu0 %v919, 127
        %v988 = vpop.permute.xlu0 %987
        %vm989 = vcmp.lt.s32.totalorder %v352, 127
        %v990 = vsel %vm989, %v986, %v988
        %v991 = vsel %vm989, %v988, %v986
        %v992 = vmul.f32 %v990, %v388
        %v993 = vmul.f32 %v991, %v389
        %v994 = vadd.f32 %v983, %v992
        %v995 = vadd.f32 %v984, %v993
        %996 = vrot.lane.b32.xlu0 %v923, 113
        %v997 = vpop.permute.xlu0 %996
        %998 = vrot.lane.b32.xlu0 %v925, 113
        %v999 = vpop.permute.xlu0 %998
        %vm1000 = vcmp.lt.s32.totalorder %v352, 113
        %v1001 = vsel %vm1000, %v997, %v999
        %v1002 = vsel %vm1000, %v999, %v997
        %v1003 = vmul.f32 %v1001, %v394
        %v1004 = vmul.f32 %v1002, %v395
        %v1005 = vadd.f32 %v994, %v1003
        %v1006 = vadd.f32 %v995, %v1004
        %1007 = vrot.lane.b32.xlu0 %v927, 112
        %v1008 = vpop.permute.xlu0 %1007
        %1009 = vrot.lane.b32.xlu0 %v929, 112
        %v1010 = vpop.permute.xlu0 %1009
        %vm1011 = vcmp.lt.s32.totalorder %v352, 112
        %v1012 = vsel %vm1011, %v1008, %v1010
        %v1013 = vsel %vm1011, %v1010, %v1008
        %v1014 = vmul.f32 %v1012, %v398
        %v1015 = vmul.f32 %v1013, %v399
        %v1016 = vadd.f32 %v1005, %v1014
        %v1017 = vadd.f32 %v1006, %v1015
        %1018 = vrot.lane.b32.xlu0 %v933, 111
        %v1019 = vpop.permute.xlu0 %1018
        %1020 = vrot.lane.b32.xlu0 %v935, 111
        %v1021 = vpop.permute.xlu0 %1020
        %vm1022 = vcmp.lt.s32.totalorder %v352, 111
        %v1023 = vsel %vm1022, %v1019, %v1021
        %v1024 = vsel %vm1022, %v1021, %v1019
        %v1025 = vmul.f32 %v1023, %v404
        %v1026 = vmul.f32 %v1024, %v405
        %v1027 = vadd.f32 %v1016, %v1025
        %v1028 = vadd.f32 %v1017, %v1026
        %1030 = vset.pattern.permute.xlu0 0
        %1031 = vperm.xlu0 %1030, %v350
        %v1032 = vpop.permute.xlu0 %1031
        %v1034 = vadd.f32 %v1027, %v1032
        %v1035 = vadd.f32 %v1028, %v1032
        %1036 = vst [vmem:[%s325] sm:$0xff] %v1034
        %1037 = vst [vmem:[%s325 + $0x8] sm:$0xff] %v1035
        %s1038 = sand.u32 %s225, 1
        %s1039 = scalar_lea.sflag [#allocation3], %s1038
        %s1040 = sand.u32 %s225, 1
        %s1041 = smul.addr %s1040, 16
        %s1042 = scalar_lea.vmem [#allocation2], %s1041
        // Predicated region
        $region57: #{tpu_custom_call.1} parent=55 // pred_check
          %p1043 = pneg %p235
        $region58: #{tpu_custom_call.1} parent=55 // pred_check_branch
          %1045 = sbr.rel (%p1043) target = $region60
        $region59: #{tpu_custom_call.1} parent=55 // pred_region
          %s1047 = ssub.s32 256, 256
          %1048 = vsyncadd %s1039, %s1047
          %s1049 = smul.addr %s23, 2
          %s1050 = smul.addr %s1049, 128
          %s1051 = scalar_lea.hbm %s9, %s1050
          %s1053 = sshll.u32 %s1042, 4
          %s1054 = int_to_ptr.vmem [resolvable:$true] %s1053
          %1056 = dma.vmem_to_hbm [thread:$0]  %s1054, 256, %s1051, %s1039
        $region60: #{tpu_custom_call.1} parent=55 // pred_fallthru
          _
      $region56: #{tpu_custom_call.1} parent=5 // pred_fallthru
        _
      %p1057 = scmp.le.s32.totalorder 2, %s18
      // Predicated region
      $region61: #{tpu_custom_call.1} parent=5 // pred_check
        %p1058 = pneg %p1057
      $region62: #{tpu_custom_call.1} parent=5 // pred_check_branch
        %1060 = sbr.rel (%p1058) target = $region64
      $region63: #{tpu_custom_call.1} parent=5 // pred_region
        %s1061 = ssub.s32 %s18, 2
        // Predicated region
        $region65: #{tpu_custom_call.1} parent=63 // pred_check
          %p1062 = pneg %p241
        $region66: #{tpu_custom_call.1} parent=63 // pred_check_branch
          %1064 = sbr.rel (%p1062) target = $region68
        $region67: #{tpu_custom_call.1} parent=63 // pred_region
          %s1065 = sand.u32 %s226, 1
          %s1066 = scalar_lea.sflag [#allocation3], %s1065
          %s1067 = sand.u32 %s226, 1
          %s1068 = smul.addr %s1067, 16
          %s1069 = scalar_lea.vmem [#allocation2], %s1068
          %1070 = dma.done %s1066, 256
        $region68: #{tpu_custom_call.1} parent=63 // pred_fallthru
          _
      $region64: #{tpu_custom_call.1} parent=5 // pred_fallthru
        _
    $region6: #{tpu_custom_call.1} parent=1 // loop_footer
      %s22 = sadd.s32 1, %s18
    $region7: #{tpu_custom_call.1} parent=1 // loop_footer_branch
      %17 = sbr.rel target = $region3
    $region8: #{tpu_custom_call.1} parent=1 // loop_exit
      _
    %1071 = vsyncpa [#allocation3], 1
    %s1072 = scalar_lea.sflag [#allocation3], 1
    %1073 = vsyncpa %s1072, 1

</llo_original>
